<compile_context>
chip_gen: v7x
topology: tpu7x:2x2x1
jax: 0.10.0
libtpu: 0.0.40
codegen_flags: <defaults>
</compile_context>

<pallas_src>
import jax
import jax.numpy as jnp
from jax.experimental import pallas as pl
from jax.experimental.pallas import tpu as pltpu

STATE_DIM = 4
HIDDEN = 64
ACTION_DIM = 6

LANE = 128
MAX_TILE_B = 2048          # lanes per grid step; far under any VMEM budget

# ---- packed parameter slab layout (SLAB_ROWS x 128 lanes, f32) --------------
#   rows 0:64 , cols 0:4   -> fc1 weight (64, 4)   (torch layout: (out, in))
#   rows 0:64 , col  4     -> fc1 bias   (64,)
#   rows 64:70, cols 0:64  -> fc2 weight (6, 64)
#   rows 64:70, col  64    -> fc2 bias   (6,)
SLAB_ROWS = 72             # 64 + 6, rounded up to a multiple of 8 sublanes


def qnet_kernel(p_ref, x_ref, o_ref):
    # Static views into the VMEM-resident parameter slab (no extra DMAs).
    w1 = p_ref[0:HIDDEN, 0:STATE_DIM]                          # (64, 4)
    b1 = p_ref[0:HIDDEN, STATE_DIM:STATE_DIM + 1]              # (64, 1)
    w2 = p_ref[HIDDEN:HIDDEN + ACTION_DIM, 0:HIDDEN]           # (6, 64)
    b2 = p_ref[HIDDEN:HIDDEN + ACTION_DIM, HIDDEN:HIDDEN + 1]  # (6, 1)

    x = x_ref[...]                                             # (4, TILE_B) lane-dense

    # fc1 + ReLU: (64,4) @ (4,TILE_B) on the MXU, f32 accumulation.
    h = jnp.dot(w1, x, preferred_element_type=jnp.float32) + b1
    h = jnp.maximum(h, 0.0)

    # fc2: (6,64) @ (64,TILE_B)
    o = jnp.dot(w2, h, preferred_element_type=jnp.float32) + b2
    o_ref[...] = o.astype(o_ref.dtype)


def pack_params(w1, b1, w2, b2):
    """Pack torch-layout params into one (72, 128) f32 slab (single resident DMA)."""
    slab = jnp.zeros((SLAB_ROWS, LANE), jnp.float32)
    slab = slab.at[0:HIDDEN, 0:STATE_DIM].set(w1.astype(jnp.float32))
    slab = slab.at[0:HIDDEN, STATE_DIM].set(b1.astype(jnp.float32))
    slab = slab.at[HIDDEN:HIDDEN + ACTION_DIM, 0:HIDDEN].set(w2.astype(jnp.float32))
    slab = slab.at[HIDDEN:HIDDEN + ACTION_DIM, HIDDEN].set(b2.astype(jnp.float32))
    return slab


def _round_up(n, m):
    return ((n + m - 1) // m) * m


@jax.jit
def qnet_forward(x, param_slab):
    """x: (B, STATE_DIM) f32 -> (B, ACTION_DIM) f32 (same math as the torch QNet)."""
    B = x.shape[0]
    b128 = max(LANE, _round_up(B, LANE))        # lane-multiple batch
    tile_b = min(MAX_TILE_B, b128)              # single step for B <= 2048
    b_pad = _round_up(b128, tile_b)             # pad only to the tile multiple
    grid = (b_pad // tile_b,)

    # Put batch on the lane axis and zero-pad to the padded lane count.
    x_t = jnp.pad(x.astype(jnp.float32).T, ((0, 0), (0, b_pad - B)))  # (4, b_pad)

    out_t = pl.pallas_call(
        qnet_kernel,
        out_shape=jax.ShapeDtypeStruct((ACTION_DIM, b_pad), jnp.float32),
        grid=grid,
        in_specs=[
            # Parameter slab: constant block index -> fetched once, VMEM-resident.
            pl.BlockSpec((SLAB_ROWS, LANE), lambda i: (0, 0)),
            pl.BlockSpec((STATE_DIM, tile_b), lambda i: (0, i)),
        ],
        out_specs=pl.BlockSpec((ACTION_DIM, tile_b), lambda i: (0, i)),
        compiler_params=pltpu.CompilerParams(
            dimension_semantics=("parallel",),   # v7x: shard batch tiles across 2 TCs
        ),
    )(param_slab, x_t)

    return out_t[:, :B].T                        # back to (B, ACTION_DIM)


def init_params(key):
    """Deterministic init mirroring nn.Linear's U(-1/sqrt(fan_in), 1/sqrt(fan_in)).

    Weights kept in torch layout: w1 (64, 4), w2 (6, 64)."""
    k1, k2, k3, k4 = jax.random.split(key, 4)
    bnd1 = 1.0 / jnp.sqrt(jnp.float32(STATE_DIM))
    bnd2 = 1.0 / jnp.sqrt(jnp.float32(HIDDEN))
    w1 = jax.random.uniform(k1, (HIDDEN, STATE_DIM), jnp.float32, -bnd1, bnd1)
    b1 = jax.random.uniform(k2, (HIDDEN,), jnp.float32, -bnd1, bnd1)
    w2 = jax.random.uniform(k3, (ACTION_DIM, HIDDEN), jnp.float32, -bnd2, bnd2)
    b2 = jax.random.uniform(k4, (ACTION_DIM,), jnp.float32, -bnd2, bnd2)
    return w1, b1, w2, b2


if __name__ == "__main__":
    key = jax.random.PRNGKey(0)
    kx, kx2, kx3, kp = jax.random.split(key, 4)

    w1, b1, w2, b2 = init_params(kp)
    slab = pack_params(w1, b1, w2, b2)

    def ref_fn(x):
        return jnp.maximum(x @ w1.T + b1, 0.0) @ w2.T + b2

    # Small inference-style batch (single grid step, single lane tile).
    xa = jax.random.normal(kx, (8, STATE_DIM), jnp.float32)
    oa = jax.block_until_ready(qnet_forward(xa, slab))
    assert oa.shape == (8, ACTION_DIM)
    assert jnp.allclose(oa, ref_fn(xa), atol=1e-4, rtol=1e-4)

    # Ragged batch (exercises lane padding, still one grid step).
    xb = jax.random.normal(kx2, (300, STATE_DIM), jnp.float32)
    ob = jax.block_until_ready(qnet_forward(xb, slab))
    assert ob.shape == (300, ACTION_DIM)
    assert jnp.allclose(ob, ref_fn(xb), atol=1e-4, rtol=1e-4)

    # Training-style batch exceeding MAX_TILE_B (exercises grid > 1).
    xc = jax.random.normal(kx3, (2500, STATE_DIM), jnp.float32)
    oc = jax.block_until_ready(qnet_forward(xc, slab))
    assert oc.shape == (2500, ACTION_DIM)
    assert jnp.allclose(oc, ref_fn(xc), atol=1e-4, rtol=1e-4)

    print("KERNEL_OK")
</pallas_src>

<mosaic_0001>
module attributes {stable_mosaic.version = 11 : i64} {
  func.func @qnet_kernel(%arg0: i32, %arg1: memref<72x128xf32, #tpu.memory_space<vmem>>, %arg2: memref<4x128xf32, #tpu.memory_space<vmem>>, %arg3: memref<6x128xf32, #tpu.memory_space<vmem>>) attributes {dimension_semantics = [#tpu.dimension_semantics<parallel>], iteration_bounds = array<i64: 1>, scalar_prefetch = 0 : i64, scratch_operands = 0 : i64, tpu.core_type = #tpu.core_type<tc>, window_params = [{pipeline_mode = #tpu.pipeline_mode<synchronous>, transform_indices = @transform_0, window_bounds = array<i64: 72, 128>}, {transform_indices = @transform_1, window_bounds = array<i64: 4, 128>}, {transform_indices = @transform_2, window_bounds = array<i64: 6, 128>}]} {
    %c0 = arith.constant 0 : index
    %c0_0 = arith.constant 0 : index
    %0 = vector.load %arg1[%c0, %c0_0] : memref<72x128xf32, #tpu.memory_space<vmem>>, vector<64x4xf32>
    %c0_1 = arith.constant 0 : index
    %c4 = arith.constant 4 : index
    %1 = vector.load %arg1[%c0_1, %c4] : memref<72x128xf32, #tpu.memory_space<vmem>>, vector<64x1xf32>
    %c64 = arith.constant 64 : index
    %c0_2 = arith.constant 0 : index
    %2 = vector.load %arg1[%c64, %c0_2] : memref<72x128xf32, #tpu.memory_space<vmem>>, vector<6x64xf32>
    %c64_3 = arith.constant 64 : index
    %c64_4 = arith.constant 64 : index
    %3 = vector.load %arg1[%c64_3, %c64_4] : memref<72x128xf32, #tpu.memory_space<vmem>>, vector<6x1xf32>
    %c0_5 = arith.constant 0 : index
    %c0_6 = arith.constant 0 : index
    %4 = vector.load %arg2[%c0_5, %c0_6] : memref<4x128xf32, #tpu.memory_space<vmem>>, vector<4x128xf32>
    %cst = arith.constant dense<0.000000e+00> : vector<64x128xf32>
    %5 = tpu.matmul %0, %4, %cst {dimension_numbers = #tpu.dot_dimension_numbers<[1], [0], [0], [1], [0, 0, 1, 1], [], []>} : vector<64x4xf32>, vector<4x128xf32>, vector<64x128xf32> -> vector<64x128xf32>
    %6 = vector.broadcast %1 : vector<64x1xf32> to vector<64x128xf32>
    %7 = arith.addf %5, %6 : vector<64x128xf32>
    %cst_7 = arith.constant 0.000000e+00 : f32
    %8 = vector.broadcast %cst_7 : f32 to vector<64x128xf32>
    %9 = arith.maximumf %7, %8 : vector<64x128xf32>
    %cst_8 = arith.constant dense<0.000000e+00> : vector<6x128xf32>
    %10 = tpu.matmul %2, %9, %cst_8 {dimension_numbers = #tpu.dot_dimension_numbers<[1], [0], [0], [1], [0, 0, 1, 1], [], []>} : vector<6x64xf32>, vector<64x128xf32>, vector<6x128xf32> -> vector<6x128xf32>
    %11 = vector.broadcast %3 : vector<6x1xf32> to vector<6x128xf32>
    %12 = arith.addf %10, %11 : vector<6x128xf32>
    %c0_9 = arith.constant 0 : index
    %c0_10 = arith.constant 0 : index
    %13 = vector.load %arg3[%c0_9, %c0_10] : memref<6x128xf32, #tpu.memory_space<vmem>>, vector<6x128xf32>
    tpu.vector_store %arg3[%c0_9, %c0_10], %12 {strides = array<i32>} : memref<6x128xf32, #tpu.memory_space<vmem>>, vector<6x128xf32>,
    return
  }
  func.func @transform_0(%arg0: i32) -> (i32, i32) {
    %c0_i32 = arith.constant 0 : i32
    %c0_i32_0 = arith.constant 0 : i32
    %c0_i32_1 = arith.constant 0 : i32
    return %c0_i32, %c0_i32_0 : i32, i32
  }
  func.func @transform_1(%arg0: i32) -> (i32, i32) {
    %c0_i32 = arith.constant 0 : i32
    %c0_i32_0 = arith.constant 0 : i32
    return %c0_i32, %arg0 : i32, i32
  }
  func.func @transform_2(%arg0: i32) -> (i32, i32) {
    %c0_i32 = arith.constant 0 : i32
    %c0_i32_0 = arith.constant 0 : i32
    return %c0_i32, %arg0 : i32, i32
  }
}

</mosaic_0001>

<llo_original>
// kernel: qnet_forward.1
$region0: #{qnet_forward.1}
  #allocation0 [shape = 'u32[]', space=smem, size = 0x4, offset = 0x4, fixed_abs, tag = 'smem constant byte address 0x4 - core index']
  #allocation1 [shape = 'u32[144,128]{1,0:T(1,128)}', space=vmem, size = 0x12000, scoped, tag = 'internal scratch']
  %s0 = inlined_call_operand.hbm [shape: f32[72,128], index: 0, kind: input, shape index: {}]
  %s1 = inlined_call_operand.vmem [shape: f32[4,128], index: 1, kind: input, shape index: {}]
  %s2 = inlined_call_operand.vmem [shape: f32[6,128], index: 2, kind: output, shape index: {}]
  %s3 = sld [smem:[#allocation0]]
  $region22: #{qnet_forward.1} parent=0
    _
  %s5 = ssub.s32 1, %s3
  %s6 = scalar_select 0, %s5, %s3
  $region1: #{qnet_forward.1} parent=0
    #allocation2 [shape = 'u8[36864]{0}', space=vmem, size = 0x9000, scoped, tag = 'input window, operand 0, single buffered']
    #allocation3 [shape = 's32[1]{0}', space=sflag, size = 0x4, scoped, tag = 'scoped memory for qnet_forward.1']
    %7 = vsyncpa [#allocation3], 0
    // Predicated region
    $region2: #{qnet_forward.1} parent=1 // pred_check
      _
    $region3: #{qnet_forward.1} parent=1 // pred_check_branch
      %9 = sbr.rel (0) target = $region5
    $region4: #{qnet_forward.1} parent=1 // pred_region
      %s11 = ssub.s32 1152, 1152
      %12 = vsyncadd [#allocation3], %s11
      %s13 = sshll.u32 [#allocation2], 4
      %s14 = int_to_ptr.vmem [resolvable:$true] %s13
      %19 = dma.hbm_to_vmem [thread:$0]  %s0, 1152, %s14, [#allocation3], 128, 128, 8
    $region5: #{qnet_forward.1} parent=1 // pred_fallthru
      _
    // Predicated region
    $region6: #{qnet_forward.1} parent=1 // pred_check
      _
    $region7: #{qnet_forward.1} parent=1 // pred_check_branch
      %21 = sbr.rel (0) target = $region9
    $region8: #{qnet_forward.1} parent=1 // pred_region
      _
    $region9: #{qnet_forward.1} parent=1 // pred_fallthru
      _
    // Predicated region
    $region10: #{qnet_forward.1} parent=1 // pred_check
      _
    $region11: #{qnet_forward.1} parent=1 // pred_check_branch
      %23 = sbr.rel (0) target = $region13
    $region12: #{qnet_forward.1} parent=1 // pred_region
      %24 = dma.done [#allocation3], 1152
    $region13: #{qnet_forward.1} parent=1 // pred_fallthru
      _
    %v25 = vld [vmem:[#allocation2] sm:$0xff]
    %v26 = vld [vmem:[#allocation2 + $0x8] sm:$0xff]
    %v27 = vld [vmem:[#allocation2 + $0x10] sm:$0xff]
    %v28 = vld [vmem:[#allocation2 + $0x18] sm:$0xff]
    %v29 = vld [vmem:[#allocation2 + $0x20] sm:$0xff]
    %v30 = vld [vmem:[#allocation2 + $0x28] sm:$0xff]
    %v31 = vld [vmem:[#allocation2 + $0x30] sm:$0xff]
    %v32 = vld [vmem:[#allocation2 + $0x38] sm:$0xff]
    %v33 = vld [vmem:[#allocation2 + $0x40] sm:$0x3f]
    %v34 = vld [vmem:[%s1] sm:$0xf]
    %36 = vset.pattern.permute.xlu0 4
    %37 = vperm.xlu0 %36, %v25
    %v38 = vpop.permute.xlu0 %37
    %41 = vset.pattern.permute.xlu0 4
    %42 = vperm.xlu0 %41, %v26
    %v43 = vpop.permute.xlu0 %42
    %46 = vset.pattern.permute.xlu0 4
    %47 = vperm.xlu0 %46, %v27
    %v48 = vpop.permute.xlu0 %47
    %51 = vset.pattern.permute.xlu0 4
    %52 = vperm.xlu0 %51, %v28
    %v53 = vpop.permute.xlu0 %52
    %56 = vset.pattern.permute.xlu0 4
    %57 = vperm.xlu0 %56, %v29
    %v58 = vpop.permute.xlu0 %57
    %61 = vset.pattern.permute.xlu0 4
    %62 = vperm.xlu0 %61, %v30
    %v63 = vpop.permute.xlu0 %62
    %66 = vset.pattern.permute.xlu0 4
    %67 = vperm.xlu0 %66, %v31
    %v68 = vpop.permute.xlu0 %67
    %71 = vset.pattern.permute.xlu0 4
    %72 = vperm.xlu0 %71, %v32
    %v73 = vpop.permute.xlu0 %72
    %vm75 = vcmask 31744
    %v76 = vsel %vm75, %v25, 0
    %v78 = vsel %vm75, %v26, 0
    %v80 = vsel %vm75, %v27, 0
    %v82 = vsel %vm75, %v28, 0
    %v84 = vsel %vm75, %v29, 0
    %v86 = vsel %vm75, %v30, 0
    %v88 = vsel %vm75, %v31, 0
    %v90 = vsel %vm75, %v32, 0
    %vm92 = vcmask 1043456
    %v94 = vsel %vm92, %v34, 0
    %96 = vmatprep.subr.mxu0 0.0
    %97 = vmatpush1.msra.mxu0 %v94
    %98 = vmatprep.subr.mxu0 0.0
    %99 = vmatpush1.msra.mxu0 0.0
    %100 = vmatprep.subr.mxu0 0.0
    %101 = vmatpush1.msra.mxu0 0.0
    %102 = vmatprep.subr.mxu0 0.0
    %103 = vmatpush1.msra.mxu0 0.0
    %104 = vmatprep.subr.mxu0 0.0
    %105 = vmatpush1.msra.mxu0 0.0
    %106 = vmatprep.subr.mxu0 0.0
    %107 = vmatpush1.msra.mxu0 0.0
    %108 = vmatprep.subr.mxu0 0.0
    %109 = vmatpush1.msra.mxu0 0.0
    %110 = vmatprep.subr.mxu0 0.0
    %111 = vmatpush1.msra.mxu0 0.0
    %112 = vmatprep.subr.mxu0 0.0
    %113 = vmatpush1.msra.mxu0 0.0
    %114 = vmatprep.subr.mxu0 0.0
    %115 = vmatpush1.msra.mxu0 0.0
    %116 = vmatprep.subr.mxu0 0.0
    %117 = vmatpush1.msra.mxu0 0.0
    %118 = vmatprep.subr.mxu0 0.0
    %119 = vmatpush1.msra.mxu0 0.0
    %120 = vmatprep.subr.mxu0 0.0
    %121 = vmatpush1.msra.mxu0 0.0
    %122 = vmatprep.subr.mxu0 0.0
    %123 = vmatpush1.msra.mxu0 0.0
    %124 = vmatprep.subr.mxu0 0.0
    %125 = vmatpush1.msra.mxu0 0.0
    %126 = vmatprep.subr.mxu0 0.0
    %127 = vmatpush1.msra.mxu0 0.0
    %128 = vmatprep.subr.mxu0 0.0
    %129 = vmatpush1.msra.mxu0 0.0
    %130 = vmatprep.subr.mxu0 0.0
    %131 = vmatpush1.msra.mxu0 0.0
    %132 = vmatprep.subr.mxu0 0.0
    %133 = vmatpush1.msra.mxu0 0.0
    %134 = vmatprep.subr.mxu0 0.0
    %135 = vmatpush1.msra.mxu0 0.0
    %136 = vmatprep.subr.mxu0 0.0
    %137 = vmatpush1.msra.mxu0 0.0
    %138 = vmatprep.subr.mxu0 0.0
    %139 = vmatpush1.msra.mxu0 0.0
    %140 = vmatprep.subr.mxu0 0.0
    %141 = vmatpush1.msra.mxu0 0.0
    %142 = vmatprep.subr.mxu0 0.0
    %143 = vmatpush1.msra.mxu0 0.0
    %144 = vmatprep.subr.mxu0 0.0
    %145 = vmatpush1.msra.mxu0 0.0
    %146 = vmatprep.subr.mxu0 0.0
    %147 = vmatpush1.msra.mxu0 0.0
    %148 = vmatprep.subr.mxu0 0.0
    %149 = vmatpush1.msra.mxu0 0.0
    %150 = vmatprep.subr.mxu0 0.0
    %151 = vmatpush1.msra.mxu0 0.0
    %152 = vmatprep.subr.mxu0 0.0
    %153 = vmatpush1.msra.mxu0 0.0
    %154 = vmatprep.subr.mxu0 0.0
    %155 = vmatpush1.msra.mxu0 0.0
    %156 = vmatprep.subr.mxu0 0.0
    %157 = vmatpush1.msra.mxu0 0.0
    %158 = vmatprep.subr.mxu0 0.0
    %159 = vmatpush1.msra.mxu0 0.0
    %160 = vmatprep.mubr.f32.mxu0 0.0
    %161 = vmatmul.mubr.f32.gmra.mrb[0].mxu0 %v76
    %v162 = vpop.f32.mrb[0].mxu0
    %v163 = vadd.f32 %v38, %v162
    %v164 = vpop.f32.mrb[0].mxu0
    %165 = vmatprep.mubr.f32.mxu0 0.0
    %166 = vmatmul.mubr.f32.gmra.mrb[0].mxu0 %v78
    %v167 = vpop.f32.mrb[0].mxu0
    %v168 = vadd.f32 %v43, %v167
    %v169 = vpop.f32.mrb[0].mxu0
    %170 = vmatprep.mubr.f32.mxu0 0.0
    %171 = vmatmul.mubr.f32.gmra.mrb[0].mxu0 %v80
    %v172 = vpop.f32.mrb[0].mxu0
    %v173 = vadd.f32 %v48, %v172
    %v174 = vpop.f32.mrb[0].mxu0
    %175 = vmatprep.mubr.f32.mxu0 0.0
    %176 = vmatmul.mubr.f32.gmra.mrb[0].mxu0 %v82
    %v177 = vpop.f32.mrb[0].mxu0
    %v178 = vadd.f32 %v53, %v177
    %v179 = vpop.f32.mrb[0].mxu0
    %180 = vmatprep.mubr.f32.mxu0 0.0
    %181 = vmatmul.mubr.f32.gmra.mrb[0].mxu0 %v84
    %v182 = vpop.f32.mrb[0].mxu0
    %v183 = vadd.f32 %v58, %v182
    %v184 = vpop.f32.mrb[0].mxu0
    %185 = vmatprep.mubr.f32.mxu0 0.0
    %186 = vmatmul.mubr.f32.gmra.mrb[0].mxu0 %v86
    %v187 = vpop.f32.mrb[0].mxu0
    %v188 = vadd.f32 %v63, %v187
    %v189 = vpop.f32.mrb[0].mxu0
    %190 = vmatprep.mubr.f32.mxu0 0.0
    %191 = vmatmul.mubr.f32.gmra.mrb[0].mxu0 %v88
    %v192 = vpop.f32.mrb[0].mxu0
    %v193 = vadd.f32 %v68, %v192
    %v194 = vpop.f32.mrb[0].mxu0
    %195 = vmatprep.mubr.f32.mxu0 0.0
    %196 = vmatmul.mubr.f32.gmra.mrb[0].mxu0 %v90
    %v197 = vpop.f32.mrb[0].mxu0
    %v198 = vadd.f32 %v73, %v197
    %v199 = vpop.f32.mrb[0].mxu0
    %200 = vdwg.mxu0
    %v201 = vmax.f32 %v163, 0.0
    %v202 = vmax.f32 %v168, 0.0
    %v203 = vmax.f32 %v173, 0.0
    %v204 = vmax.f32 %v178, 0.0
    %v205 = vmax.f32 %v183, 0.0
    %v206 = vmax.f32 %v188, 0.0
    %v207 = vmax.f32 %v193, 0.0
    %v208 = vmax.f32 %v198, 0.0
    %210 = vset.pattern.permute.xlu0 64
    %211 = vperm.xlu0 %210, %v33
    %v212 = vpop.permute.xlu0 %211
    %vm214 = vcmask 523264
    %v215 = vsel %vm214, %v33, 0
    %217 = vmatprep.subr.mxu0 0.0
    %218 = vmatpush1.msra.mxu0 %v201
    %219 = vmatprep.subr.mxu0 0.0
    %220 = vmatpush1.msra.mxu0 %v202
    %221 = vmatprep.subr.mxu0 0.0
    %222 = vmatpush1.msra.mxu0 %v203
    %223 = vmatprep.subr.mxu0 0.0
    %224 = vmatpush1.msra.mxu0 %v204
    %225 = vmatprep.subr.mxu0 0.0
    %226 = vmatpush1.msra.mxu0 %v205
    %227 = vmatprep.subr.mxu0 0.0
    %228 = vmatpush1.msra.mxu0 %v206
    %229 = vmatprep.subr.mxu0 0.0
    %230 = vmatpush1.msra.mxu0 %v207
    %231 = vmatprep.subr.mxu0 0.0
    %232 = vmatpush1.msra.mxu0 %v208
    %233 = vmatprep.subr.mxu0 0.0
    %234 = vmatpush1.msra.mxu0 0.0
    %235 = vmatprep.subr.mxu0 0.0
    %236 = vmatpush1.msra.mxu0 0.0
    %237 = vmatprep.subr.mxu0 0.0
    %238 = vmatpush1.msra.mxu0 0.0
    %239 = vmatprep.subr.mxu0 0.0
    %240 = vmatpush1.msra.mxu0 0.0
    %241 = vmatprep.subr.mxu0 0.0
    %242 = vmatpush1.msra.mxu0 0.0
    %243 = vmatprep.subr.mxu0 0.0
    %244 = vmatpush1.msra.mxu0 0.0
    %245 = vmatprep.subr.mxu0 0.0
    %246 = vmatpush1.msra.mxu0 0.0
    %247 = vmatprep.subr.mxu0 0.0
    %248 = vmatpush1.msra.mxu0 0.0
    %249 = vmatprep.subr.mxu0 0.0
    %250 = vmatpush1.msra.mxu0 0.0
    %251 = vmatprep.subr.mxu0 0.0
    %252 = vmatpush1.msra.mxu0 0.0
    %253 = vmatprep.subr.mxu0 0.0
    %254 = vmatpush1.msra.mxu0 0.0
    %255 = vmatprep.subr.mxu0 0.0
    %256 = vmatpush1.msra.mxu0 0.0
    %257 = vmatprep.subr.mxu0 0.0
    %258 = vmatpush1.msra.mxu0 0.0
    %259 = vmatprep.subr.mxu0 0.0
    %260 = vmatpush1.msra.mxu0 0.0
    %261 = vmatprep.subr.mxu0 0.0
    %262 = vmatpush1.msra.mxu0 0.0
    %263 = vmatprep.subr.mxu0 0.0
    %264 = vmatpush1.msra.mxu0 0.0
    %265 = vmatprep.subr.mxu0 0.0
    %266 = vmatpush1.msra.mxu0 0.0
    %267 = vmatprep.subr.mxu0 0.0
    %268 = vmatpush1.msra.mxu0 0.0
    %269 = vmatprep.subr.mxu0 0.0
    %270 = vmatpush1.msra.mxu0 0.0
    %271 = vmatprep.subr.mxu0 0.0
    %272 = vmatpush1.msra.mxu0 0.0
    %273 = vmatprep.subr.mxu0 0.0
    %274 = vmatpush1.msra.mxu0 0.0
    %275 = vmatprep.subr.mxu0 0.0
    %276 = vmatpush1.msra.mxu0 0.0
    %277 = vmatprep.subr.mxu0 0.0
    %278 = vmatpush1.msra.mxu0 0.0
    %279 = vmatprep.subr.mxu0 0.0
    %280 = vmatpush1.msra.mxu0 0.0
    %281 = vmatprep.mubr.f32.mxu0 0.0
    %282 = vmatmul.mubr.f32.gmra.mrb[0].mxu0 %v215
    %v283 = vpop.f32.mrb[0].mxu0
    %v284 = vadd.f32 %v212, %v283
    %v285 = vpop.f32.mrb[0].mxu0
    %286 = vdwg.mxu0
    %287 = vst [vmem:[%s2] sm:$0x3f] %v284
    // Predicated region
    $region14: #{qnet_forward.1} parent=1 // pred_check
      _
    $region15: #{qnet_forward.1} parent=1 // pred_check_branch
      %289 = sbr.rel (0) target = $region17
    $region16: #{qnet_forward.1} parent=1 // pred_region
      _
    $region17: #{qnet_forward.1} parent=1 // pred_fallthru
      _
    // Predicated region
    $region18: #{qnet_forward.1} parent=1 // pred_check
      _
    $region19: #{qnet_forward.1} parent=1 // pred_check_branch
      %291 = sbr.rel (0) target = $region21
    $region20: #{qnet_forward.1} parent=1 // pred_region
      _
    $region21: #{qnet_forward.1} parent=1 // pred_fallthru
      _
    %292 = vsyncpa [#allocation3], 1

</llo_original>
